<compile_context>
chip_gen: v5e
topology: v5e:2x2
jax: 0.10.0
libtpu: 0.0.40
codegen_flags: <defaults>
</compile_context>

<pallas_src>
import functools
import math

import jax
import jax.numpy as jnp
from jax.experimental import pallas as pl
from jax.experimental.pallas import tpu as pltpu


@functools.lru_cache(maxsize=None)
def _vmem_limit_bytes():
    """~3/4 of physical VMEM (capped at 100 MiB).

    v7x (64 MiB physical)  -> ~48 MiB: leaves headroom for Mosaic scratch.
    v5e/v6e (128 MiB)      -> ~96 MiB: bigger blocks / deeper pipelining.
    """
    try:
        cap = int(pltpu.get_tpu_info().vmem_capacity_bytes)
    except Exception:
        cap = 64 * 1024 * 1024          # conservative fallback: v7x-sized VMEM
    return min((cap * 3) // 4, 100 * 1024 * 1024)


def _pick_tile(dim, target):
    """Largest legal tile <= target.

    Returns either `dim` itself (a full-extent block is always layout-legal) or
    a power-of-two multiple of 128 that divides `dim` (keeps the (8,128) /
    lane-alignment rules satisfied for non-full blocks).
    NOTE: a ragged `dim` (no 128-multiple divisor) falls back to a full-extent
    block, which for very large dims can exceed the VMEM budget.
    """
    if dim <= target:
        return dim
    t = target
    while t >= 128:
        if dim % t == 0:
            return t
        t //= 2
    return dim


# ----------------------------------------------------------------------------
# Tiled linear:  y = x @ W_t + b      (W_t already transposed to (Din, Dout)
# and pre-cast to the MXU operand dtype at init)
# ----------------------------------------------------------------------------
def _linear_kernel_single_k(x_ref, w_ref, b_ref, o_ref, *, compute_dtype):
    # Whole contraction fits one tile: no accumulator scratch, no k grid axis.
    x = x_ref[...]
    if compute_dtype is not None:
        x = x.astype(compute_dtype)          # weights are already compute_dtype
    acc = jnp.dot(x, w_ref[...], preferred_element_type=jnp.float32)
    o_ref[...] = (acc + b_ref[...].astype(jnp.float32)).astype(o_ref.dtype)


def _linear_kernel(x_ref, w_ref, b_ref, o_ref, acc_ref, *, compute_dtype):
    k = pl.program_id(2)

    @pl.when(k == 0)
    def _init():
        acc_ref[...] = jnp.zeros(acc_ref.shape, acc_ref.dtype)

    x = x_ref[...]
    if compute_dtype is not None:
        x = x.astype(compute_dtype)          # weights are already compute_dtype
    acc_ref[...] += jnp.dot(x, w_ref[...], preferred_element_type=jnp.float32)

    @pl.when(k == pl.num_programs(2) - 1)
    def _finalize():
        o_ref[...] = (acc_ref[...] + b_ref[...].astype(jnp.float32)).astype(o_ref.dtype)


def pallas_linear(x, w_t, b, *, out_dtype=None, compute_dtype=None,
                  tm_target=512, tn_target=1024, tk_target=1024):
    """y = x @ w_t + b.  x: (M, K), w_t: (K, N) (pre-transposed), b: (N,)."""
    M, K = x.shape
    K2, N = w_t.shape
    assert K == K2
    out_dtype = out_dtype if out_dtype is not None else x.dtype
    tm = _pick_tile(M, tm_target)
    tn = _pick_tile(N, tn_target)
    tk = _pick_tile(K, tk_target)
    b2 = b.reshape(1, N)
    vmem = _vmem_limit_bytes()

    if tk == K:
        # Single K tile: direct write, no accumulator / reduction axis.
        kernel = functools.partial(_linear_kernel_single_k,
                                   compute_dtype=compute_dtype)
        return pl.pallas_call(
            kernel,
            out_shape=jax.ShapeDtypeStruct((M, N), out_dtype),
            grid=(M // tm, N // tn),
            in_specs=[
                pl.BlockSpec((tm, K), lambda i, j: (i, 0)),
                pl.BlockSpec((K, tn), lambda i, j: (0, j)),
                pl.BlockSpec((1, tn), lambda i, j: (0, j)),
            ],
            out_specs=pl.BlockSpec((tm, tn), lambda i, j: (i, j)),
            compiler_params=pltpu.CompilerParams(
                dimension_semantics=("parallel", "parallel"),
                vmem_limit_bytes=vmem,
            ),
        )(x, w_t, b2)

    kernel = functools.partial(_linear_kernel, compute_dtype=compute_dtype)
    return pl.pallas_call(
        kernel,
        out_shape=jax.ShapeDtypeStruct((M, N), out_dtype),
        grid=(M // tm, N // tn, K // tk),
        in_specs=[
            pl.BlockSpec((tm, tk), lambda i, j, k: (i, k)),
            pl.BlockSpec((tk, tn), lambda i, j, k: (k, j)),
            pl.BlockSpec((1, tn), lambda i, j, k: (0, j)),
        ],
        out_specs=pl.BlockSpec((tm, tn), lambda i, j, k: (i, j)),
        scratch_shapes=[pltpu.VMEM((tm, tn), jnp.float32)],
        compiler_params=pltpu.CompilerParams(
            dimension_semantics=("parallel", "parallel", "arbitrary"),
            vmem_limit_bytes=vmem,
        ),
    )(x, w_t, b2)


# ----------------------------------------------------------------------------
# Multi-head attention: flash-style online softmax over KV tiles.
# q, k, v arrive (and leave) in lane-dense (B, S, D) layout; heads are lane
# slices handled inside the kernel.  The 1/sqrt(d_k) scale is folded into the
# Q projection weights, so no scaling happens here.
# ----------------------------------------------------------------------------
def _mha_attention_kernel(q_ref, k_ref, v_ref, *rest, num_heads, d_k, has_mask,
                          causal, tq, tk):
    if has_mask:
        mask_ref, o_ref, m_sc, l_sc, acc_sc = rest
    else:
        o_ref, m_sc, l_sc, acc_sc = rest

    qi = pl.program_id(1)
    ki = pl.program_id(2)

    @pl.when(ki == 0)
    def _init():
        m_sc[...] = jnp.full(m_sc.shape, -jnp.inf, dtype=m_sc.dtype)
        l_sc[...] = jnp.zeros(l_sc.shape, l_sc.dtype)
        acc_sc[...] = jnp.zeros(acc_sc.shape, acc_sc.dtype)

    def _compute():
        neg_big = jnp.float32(-1000000000.0)
        if has_mask:
            # int8 mask in HBM; widen once per kv step, shared by every head.
            masked_out = mask_ref[0].astype(jnp.int32) == 0            # (tq, tk)
        elif causal:
            # In-kernel causal mask: no HBM mask array at all.
            row = qi * tq + jax.lax.broadcasted_iota(jnp.int32, (tq, tk), 0)
            col = ki * tk + jax.lax.broadcasted_iota(jnp.int32, (tq, tk), 1)
            masked_out = col > row
        else:
            masked_out = None

        # TODO(synk): for num_heads >= 8 switch to lax.fori_loop(unroll=True)
        # (or a head grid axis when d_k % 128 == 0) to bound vreg live ranges.
        for hh in range(num_heads):
            lo = hh * d_k
            q_h = q_ref[0, :, lo:lo + d_k]                             # (tq, d_k)
            k_h = k_ref[0, :, lo:lo + d_k]                             # (tk, d_k)
            v_h = v_ref[0, :, lo:lo + d_k]                             # (tk, d_k)

            # scores = (q * 1/sqrt(d_k)) @ k.T  (scale already in W_q).
            s = jax.lax.dot_general(
                q_h, k_h, (((1,), (1,)), ((), ())),
                preferred_element_type=jnp.float32)                    # (tq, tk)
            if masked_out is not None:
                s = jnp.where(masked_out, neg_big, s)

            # Online-softmax update for this head.  Stats live lane-dense:
            # l is replicated across the head's d_k lanes so the finalize can
            # issue a single unmasked (tq, D) store.
            m_prev = m_sc[:, hh:hh + 1]                                # (tq, 1)
            m_new = jnp.maximum(m_prev, jnp.max(s, axis=-1, keepdims=True))
            alpha = jnp.exp(m_prev - m_new)                            # (tq, 1)
            p = jnp.exp(s - m_new)                                     # (tq, tk)
            pv = jnp.dot(p.astype(v_h.dtype), v_h,
                         preferred_element_type=jnp.float32)           # (tq, d_k)
            l_sc[:, lo:lo + d_k] = (alpha * l_sc[:, lo:lo + d_k]
                                    + jnp.sum(p, axis=-1, keepdims=True))
            acc_sc[:, lo:lo + d_k] = alpha * acc_sc[:, lo:lo + d_k] + pv
            m_sc[:, hh:hh + 1] = m_new

    if causal:
        # Skip KV tiles entirely above the diagonal: ~2x fewer matmuls/exp()s.
        pl.when(ki * tk <= qi * tq + (tq - 1))(_compute)
    else:
        _compute()

    @pl.when(ki == pl.num_programs(2) - 1)
    def _finalize():
        # Single lane-dense (tq, D) store; head merge folded into the layout.
        o_ref[0] = (acc_sc[...] * pl.reciprocal(l_sc[...], approx=False)
                    ).astype(o_ref.dtype)


def pallas_mha_attention(q, k, v, *, num_heads, d_model=None, mask=None,
                         causal=False, out_dtype=None,
                         q_block=0, k_block=0, v_block=0,
                         tq_target=256, tk_target=1024):
    """Flash-style MHA.

    q/k/v: (B, S, *) lane-dense activations.  When the fused-QKV array
    (B, S, 3*D) is passed for all three, `q_block/k_block/v_block` select the
    D-wide last-axis block (0/1/2) directly in the BlockSpec index_map, so no
    XLA slice copies are needed.  mask: (B, Sq, Sk) int8 (0 == masked) or None.
    causal=True generates the mask in-kernel and skips fully-masked KV tiles.
    """
    B, Sq, _ = q.shape
    Sk = k.shape[1]
    D = d_model if d_model is not None else q.shape[-1]
    assert D % num_heads == 0
    d_k = D // num_heads
    tq = _pick_tile(Sq, tq_target)
    tk = _pick_tile(Sk, tk_target)
    out_dtype = out_dtype if out_dtype is not None else q.dtype
    has_mask = mask is not None
    assert not (has_mask and causal), "pass either an explicit mask or causal=True"

    q_map = lambda b, qi, ki, _blk=q_block: (b, qi, _blk)
    k_map = lambda b, qi, ki, _blk=k_block: (b, ki, _blk)
    v_map = lambda b, qi, ki, _blk=v_block: (b, ki, _blk)

    in_specs = [
        pl.BlockSpec((1, tq, D), q_map),
        pl.BlockSpec((1, tk, D), k_map),
        pl.BlockSpec((1, tk, D), v_map),
    ]
    args = [q, k, v]
    if has_mask:
        in_specs.append(pl.BlockSpec((1, tq, tk), lambda b, qi, ki: (b, qi, ki)))
        args.append(mask)

    kernel = functools.partial(
        _mha_attention_kernel, num_heads=num_heads, d_k=d_k,
        has_mask=has_mask, causal=causal, tq=tq, tk=tk)

    return pl.pallas_call(
        kernel,
        out_shape=jax.ShapeDtypeStruct((B, Sq, D), out_dtype),
        grid=(B, Sq // tq, Sk // tk),            # reduction (kv) axis last
        in_specs=in_specs,
        out_specs=pl.BlockSpec((1, tq, D), lambda b, qi, ki: (b, qi, 0)),
        scratch_shapes=[
            pltpu.VMEM((tq, num_heads), jnp.float32),  # running max (1 lane/head)
            pltpu.VMEM((tq, D), jnp.float32),          # running denom (lane-dense)
            pltpu.VMEM((tq, D), jnp.float32),          # running numerator (lane-dense)
        ],
        compiler_params=pltpu.CompilerParams(
            dimension_semantics=("parallel", "parallel", "arbitrary"),
            vmem_limit_bytes=_vmem_limit_bytes(),
        ),
    )(*args)


# ----------------------------------------------------------------------------
# Module wrapper (parameter setup + glue reshapes stay in plain JAX)
# ----------------------------------------------------------------------------
class MultiHeadedAttention:
    """JAX/Pallas port of the PyTorch MultiHeadedAttention forward pass.

    mxu_dtype: operand dtype for all matmuls (f32 accumulation).  None keeps
    f32; jnp.bfloat16 pre-casts weights at init and keeps intermediate
    activations (q/k/v, attention output) in bf16 end-to-end.
    """

    def __init__(self, h, d_model, key, dropout=0.1, mxu_dtype=None):
        assert d_model % h == 0
        self.h = h
        self.d_k = d_model // h
        self.d_model = d_model
        self.mxu_dtype = mxu_dtype
        self.dropout_p = dropout   # TODO(synk): training-mode dropout not implemented

        # 4 Linear(d_model, d_model); PyTorch default init U(+-1/sqrt(fan_in)).
        bound = 1.0 / math.sqrt(d_model)
        keys = jax.random.split(key, 8)
        self.weights = [                                   # PyTorch layout (Dout, Din)
            jax.random.uniform(keys[2 * i], (d_model, d_model),
                               minval=-bound, maxval=bound, dtype=jnp.float32)
            for i in range(4)
        ]
        self.biases = [
            jax.random.uniform(keys[2 * i + 1], (d_model,),
                               minval=-bound, maxval=bound, dtype=jnp.float32)
            for i in range(4)
        ]

        param_dtype = mxu_dtype if mxu_dtype is not None else jnp.float32
        scale = 1.0 / math.sqrt(self.d_k)
        # Pre-transpose once to (Din, Dout), fold 1/sqrt(d_k) into the Q
        # projection (zero-cost scaling), pre-cast to the MXU operand dtype.
        wq_t = (self.weights[0].T * scale).astype(param_dtype)
        wk_t = self.weights[1].T.astype(param_dtype)
        wv_t = self.weights[2].T.astype(param_dtype)
        wo_t = self.weights[3].T.astype(param_dtype)
        self.weights_t = [wq_t, wk_t, wv_t, wo_t]
        self.biases_k = [self.biases[0] * scale, self.biases[1],
                         self.biases[2], self.biases[3]]       # biases stay f32
        # Fused QKV weight for the self-attention case: one matmul instead of 3.
        self.w_qkv_t = jnp.concatenate([wq_t, wk_t, wv_t], axis=1)   # (D, 3D)
        self.b_qkv = jnp.concatenate(self.biases_k[:3])              # (3D,)

    def __call__(self, query, key, value, mask=None, causal=False):
        B, Sq, D = query.shape
        Sk = key.shape[1]
        act_dtype = self.mxu_dtype if self.mxu_dtype is not None else query.dtype
        if causal:
            mask = None                       # generated in-kernel, tiles skipped
        elif mask is not None:
            mask = (mask != 0).astype(jnp.int8)   # 4x less mask traffic than f32

        if (query is key) and (key is value):
            # Self-attention: single fused QKV projection.
            qkv = pallas_linear(query.reshape(B * Sq, D), self.w_qkv_t, self.b_qkv,
                                out_dtype=act_dtype, compute_dtype=self.mxu_dtype)
            qkv = qkv.reshape(B, Sq, 3 * D)
            if D % 128 == 0:
                # Q/K/V selected via last-axis block index -> no XLA slice copies.
                x = pallas_mha_attention(
                    qkv, qkv, qkv, num_heads=self.h, d_model=D,
                    q_block=0, k_block=1, v_block=2,
                    mask=mask, causal=causal, out_dtype=act_dtype)
            else:
                # Lane-unaligned D: fall back to XLA slices (layout-legal blocks).
                q, k, v = qkv[..., :D], qkv[..., D:2 * D], qkv[..., 2 * D:]
                x = pallas_mha_attention(q, k, v, num_heads=self.h, mask=mask,
                                         causal=causal, out_dtype=act_dtype)
        else:
            q = pallas_linear(query.reshape(B * Sq, D), self.weights_t[0],
                              self.biases_k[0], out_dtype=act_dtype,
                              compute_dtype=self.mxu_dtype).reshape(B, Sq, D)
            k = pallas_linear(key.reshape(B * Sk, D), self.weights_t[1],
                              self.biases_k[1], out_dtype=act_dtype,
                              compute_dtype=self.mxu_dtype).reshape(B, Sk, D)
            v = pallas_linear(value.reshape(B * Sk, D), self.weights_t[2],
                              self.biases_k[2], out_dtype=act_dtype,
                              compute_dtype=self.mxu_dtype).reshape(B, Sk, D)
            x = pallas_mha_attention(q, k, v, num_heads=self.h, mask=mask,
                                     causal=causal, out_dtype=act_dtype)

        out = pallas_linear(x.reshape(B * Sq, D), self.weights_t[3],
                            self.biases_k[3], out_dtype=query.dtype,
                            compute_dtype=self.mxu_dtype)
        return out.reshape(B, Sq, D)


# ----------------------------------------------------------------------------
# Pure-JAX reference (same math, no Pallas) for correctness checks
# ----------------------------------------------------------------------------
def reference_forward(mha, query, key, value, mask):
    B, Sq, D = query.shape

    def proj(x, w, b):
        y = x @ w.T + b
        return jnp.transpose(y.reshape(B, -1, mha.h, mha.d_k), (0, 2, 1, 3))

    q = proj(query, mha.weights[0], mha.biases[0])
    k = proj(key, mha.weights[1], mha.biases[1])
    v = proj(value, mha.weights[2], mha.biases[2])
    scores = jnp.einsum("bhqd,bhkd->bhqk", q, k) / math.sqrt(mha.d_k)
    scores = jnp.where(mask[:, None, :, :] == 0, -1000000000.0, scores)
    p = jax.nn.softmax(scores, axis=-1)
    x = jnp.einsum("bhqk,bhkd->bhqd", p, v)
    x = jnp.transpose(x, (0, 2, 1, 3)).reshape(B, Sq, D)
    return x @ mha.weights[3].T + mha.biases[3]


if __name__ == "__main__":
    B, S, d_model, h = 2, 8, 128, 4   # d_model=128 keeps lane-aligned head slices

    root = jax.random.PRNGKey(0)
    k_param, k_x, k_q, k_k, k_v = jax.random.split(root, 5)

    # --- Test 1: self-attention, fused QKV (block-index split), in-kernel
    #             causal mask + tile skipping, f32 operands ---------------------
    mha = MultiHeadedAttention(h, d_model, k_param, mxu_dtype=None)
    x_in = jax.random.normal(k_x, (B, S, d_model), dtype=jnp.float32)

    out1 = jax.block_until_ready(mha(x_in, x_in, x_in, causal=True))
    causal_mask = jnp.broadcast_to(jnp.tril(jnp.ones((S, S), jnp.float32)), (B, S, S))
    ref1 = reference_forward(mha, x_in, x_in, x_in, causal_mask)
    assert out1.shape == (B, S, d_model)
    assert jnp.allclose(out1, ref1, atol=2e-2, rtol=2e-2), \
        "self-attention mismatch vs reference"

    # --- Test 2: cross-attention (Sq != Sk), explicit padding mask,
    #             bf16 weights/activations end-to-end (f32 accumulation) --------
    mha_bf16 = MultiHeadedAttention(h, d_model, k_param, mxu_dtype=jnp.bfloat16)
    Sq, Sk = 8, 16
    query = jax.random.normal(k_q, (B, Sq, d_model), dtype=jnp.float32)
    key_t = jax.random.normal(k_k, (B, Sk, d_model), dtype=jnp.float32)
    value = jax.random.normal(k_v, (B, Sk, d_model), dtype=jnp.float32)
    pad_mask = jnp.broadcast_to(
        (jnp.arange(Sk) < 12).astype(jnp.float32)[None, None, :], (B, Sq, Sk))

    out2 = jax.block_until_ready(mha_bf16(query, key_t, value, mask=pad_mask))
    ref2 = reference_forward(mha_bf16, query, key_t, value, pad_mask)
    assert out2.shape == (B, Sq, d_model)
    # Tolerance covers bf16 operand quantization (accumulation is f32).
    assert jnp.allclose(out2, ref2, atol=5e-2, rtol=5e-2), \
        "cross-attention (bf16) mismatch vs reference"

    print("KERNEL_OK")
</pallas_src>

<mosaic_0001>
module attributes {stable_mosaic.version = 11 : i64} {
  func.func @_linear_kernel_single_k(%arg0: i32, %arg1: i32, %arg2: memref<16x128xf32, #tpu.memory_space<vmem>>, %arg3: memref<128x384xf32, #tpu.memory_space<vmem>>, %arg4: memref<1x384xf32, #tpu.memory_space<vmem>>, %arg5: memref<16x384xf32, #tpu.memory_space<vmem>>) attributes {dimension_semantics = [#tpu.dimension_semantics<parallel>, #tpu.dimension_semantics<parallel>], iteration_bounds = array<i64: 1, 1>, scalar_prefetch = 0 : i64, scratch_operands = 0 : i64, tpu.core_type = #tpu.core_type<tc>, window_params = [{transform_indices = @transform_0, window_bounds = array<i64: 16, 128>}, {transform_indices = @transform_1, window_bounds = array<i64: 128, 384>}, {transform_indices = @transform_2, window_bounds = array<i64: 1, 384>}, {transform_indices = @transform_3, window_bounds = array<i64: 16, 384>}]} {
    %c0 = arith.constant 0 : index
    %c0_0 = arith.constant 0 : index
    %0 = vector.load %arg2[%c0, %c0_0] : memref<16x128xf32, #tpu.memory_space<vmem>>, vector<16x128xf32>
    %c0_1 = arith.constant 0 : index
    %c0_2 = arith.constant 0 : index
    %1 = vector.load %arg3[%c0_1, %c0_2] : memref<128x384xf32, #tpu.memory_space<vmem>>, vector<128x384xf32>
    %cst = arith.constant dense<0.000000e+00> : vector<16x384xf32>
    %2 = tpu.matmul %0, %1, %cst {dimension_numbers = #tpu.dot_dimension_numbers<[1], [0], [0], [1], [0, 0, 1, 1], [], []>} : vector<16x128xf32>, vector<128x384xf32>, vector<16x384xf32> -> vector<16x384xf32>
    %c0_3 = arith.constant 0 : index
    %c0_4 = arith.constant 0 : index
    %3 = vector.load %arg4[%c0_3, %c0_4] : memref<1x384xf32, #tpu.memory_space<vmem>>, vector<1x384xf32>
    %4 = vector.broadcast %3 : vector<1x384xf32> to vector<16x384xf32>
    %5 = arith.addf %2, %4 : vector<16x384xf32>
    %c0_5 = arith.constant 0 : index
    %c0_6 = arith.constant 0 : index
    %6 = vector.load %arg5[%c0_5, %c0_6] : memref<16x384xf32, #tpu.memory_space<vmem>>, vector<16x384xf32>
    tpu.vector_store %arg5[%c0_5, %c0_6], %5 {strides = array<i32>} : memref<16x384xf32, #tpu.memory_space<vmem>>, vector<16x384xf32>,
    return
  }
  func.func @transform_0(%arg0: i32, %arg1: i32) -> (i32, i32) {
    %c0_i32 = arith.constant 0 : i32
    %c0_i32_0 = arith.constant 0 : i32
    return %arg0, %c0_i32 : i32, i32
  }
  func.func @transform_1(%arg0: i32, %arg1: i32) -> (i32, i32) {
    %c0_i32 = arith.constant 0 : i32
    %c0_i32_0 = arith.constant 0 : i32
    return %c0_i32, %arg1 : i32, i32
  }
  func.func @transform_2(%arg0: i32, %arg1: i32) -> (i32, i32) {
    %c0_i32 = arith.constant 0 : i32
    %c0_i32_0 = arith.constant 0 : i32
    return %c0_i32, %arg1 : i32, i32
  }
  func.func @transform_3(%arg0: i32, %arg1: i32) -> (i32, i32) {
    %c0_i32 = arith.constant 0 : i32
    return %arg0, %arg1 : i32, i32
  }
}

</mosaic_0001>

<llo_original>
// kernel: tpu_custom_call.1
$region0: #{tpu_custom_call.1}
  #allocation0 [shape = 'u32[]', space=smem, size = 0x4, offset = 0x4, fixed_abs, tag = 'smem constant byte address 0x4 - core index']
  #allocation1 [shape = 'u32[72,128]{1,0:T(1,128)}', space=vmem, size = 0x9000, scoped, tag = 'internal scratch']
  %s0 = inlined_call_operand.hbm [shape: f32[16,128], index: 0, kind: input, shape index: {}]
  %s1 = inlined_call_operand.hbm [shape: f32[128,384], index: 1, kind: input, shape index: {}]
  %s2 = inlined_call_operand.hbm [shape: f32[1,384], index: 2, kind: input, shape index: {}]
  %s3 = inlined_call_operand.hbm [shape: f32[16,384], index: 3, kind: output, shape index: {}]
  %s4 = sld [smem:[#allocation0]]
  $region34: #{tpu_custom_call.1} parent=0
    _
  %s6 = ssub.s32 1, %s4
  %s7 = scalar_select 0, %s6, %s4
  $region1: #{tpu_custom_call.1} parent=0
    #allocation2 [shape = 'u8[8192]{0}', space=vmem, size = 0x2000, scoped, tag = 'input window, operand 0, single buffered']
    #allocation3 [shape = 's32[1]{0}', space=sflag, size = 0x4, scoped, tag = 'scoped memory for tpu_custom_call.1']
    #allocation4 [shape = 's32[1]{0}', space=sflag, size = 0x4, scoped, tag = 'scoped memory for tpu_custom_call.1']
    #allocation5 [shape = 'u8[196608]{0}', space=vmem, size = 0x30000, scoped, tag = 'input window, operand 1, single buffered']
    #allocation6 [shape = 's32[1]{0}', space=sflag, size = 0x4, scoped, tag = 'scoped memory for tpu_custom_call.1']
    #allocation7 [shape = 'u8[1536]{0}', space=vmem, size = 0x800, scoped, tag = 'input window, operand 2, single buffered']
    #allocation8 [shape = 'u8[24576]{0}', space=vmem, size = 0x6000, scoped, tag = 'output window, operand 0, single buffered']
    %8 = vsyncpa [#allocation3], 0
    %9 = vsyncpa [#allocation6], 0
    %10 = vsyncpa [#allocation4], 0
    // Predicated region
    $region2: #{tpu_custom_call.1} parent=1 // pred_check
      _
    $region3: #{tpu_custom_call.1} parent=1 // pred_check_branch
      %12 = sbr.rel (0) target = $region5
    $region4: #{tpu_custom_call.1} parent=1 // pred_region
      %14 = vsyncadd [#allocation3], 0
      %s15 = sshll.u32 %s0, 4
      %s16 = int_to_ptr.hbm [resolvable:$true] %s15
      %s17 = sshll.u32 [#allocation2], 4
      %s18 = int_to_ptr.vmem [resolvable:$true] %s17
      %23 = dma.hbm_to_vmem [thread:$0]  %s16, 256, %s18, [#allocation3], 128, 128, 8
    $region5: #{tpu_custom_call.1} parent=1 // pred_fallthru
      _
    // Predicated region
    $region6: #{tpu_custom_call.1} parent=1 // pred_check
      _
    $region7: #{tpu_custom_call.1} parent=1 // pred_check_branch
      %25 = sbr.rel (0) target = $region9
    $region8: #{tpu_custom_call.1} parent=1 // pred_region
      %27 = vsyncadd [#allocation6], 0
      %s28 = sshll.u32 %s1, 4
      %s29 = int_to_ptr.hbm [resolvable:$true] %s28
      %s30 = sshll.u32 [#allocation5], 4
      %s31 = int_to_ptr.vmem [resolvable:$true] %s30
      %36 = dma.hbm_to_vmem [thread:$0]  %s29, 6144, %s31, [#allocation6], 384, 384, 24
    $region9: #{tpu_custom_call.1} parent=1 // pred_fallthru
      _
    // Predicated region
    $region10: #{tpu_custom_call.1} parent=1 // pred_check
      _
    $region11: #{tpu_custom_call.1} parent=1 // pred_check_branch
      %38 = sbr.rel (0) target = $region13
    $region12: #{tpu_custom_call.1} parent=1 // pred_region
      %40 = vsyncadd [#allocation6], 0
      %s42 = sshll.u32 %s2, 4
      %s43 = int_to_ptr.hbm [resolvable:$true] %s42
      %s44 = sshll.u32 [#allocation7], 4
      %s45 = int_to_ptr.vmem [resolvable:$true] %s44
      %47 = dma.hbm_to_vmem [thread:$0]  %s43, 48, %s45, [#allocation6]
    $region13: #{tpu_custom_call.1} parent=1 // pred_fallthru
      _
    // Predicated region
    $region14: #{tpu_custom_call.1} parent=1 // pred_check
      _
    $region15: #{tpu_custom_call.1} parent=1 // pred_check_branch
      %49 = sbr.rel (0) target = $region17
    $region16: #{tpu_custom_call.1} parent=1 // pred_region
      %51 = dma.done [#allocation3], 256
    $region17: #{tpu_custom_call.1} parent=1 // pred_fallthru
      _
    // Predicated region
    $region18: #{tpu_custom_call.1} parent=1 // pred_check
      _
    $region19: #{tpu_custom_call.1} parent=1 // pred_check_branch
      %53 = sbr.rel (0) target = $region21
    $region20: #{tpu_custom_call.1} parent=1 // pred_region
      %55 = dma.done [#allocation6], 6144
    $region21: #{tpu_custom_call.1} parent=1 // pred_fallthru
      _
    // Predicated region
    $region22: #{tpu_custom_call.1} parent=1 // pred_check
      _
    $region23: #{tpu_custom_call.1} parent=1 // pred_check_branch
      %57 = sbr.rel (0) target = $region25
    $region24: #{tpu_custom_call.1} parent=1 // pred_region
      %59 = dma.done [#allocation6], 48
    $region25: #{tpu_custom_call.1} parent=1 // pred_fallthru
      _
    %v60 = vld [vmem:[#allocation2] sm:$0xff]
    %v61 = vld [vmem:[#allocation2 + $0x8] sm:$0xff]
    %v62 = vld [vmem:[#allocation5] sm:$0xff]
    %v63 = vld [vmem:[#allocation5 + $0x8] sm:$0xff]
    %v64 = vld [vmem:[#allocation5 + $0x10] sm:$0xff]
    %v65 = vld [vmem:[#allocation5 + $0x18] sm:$0xff]
    %v66 = vld [vmem:[#allocation5 + $0x20] sm:$0xff]
    %v67 = vld [vmem:[#allocation5 + $0x28] sm:$0xff]
    %v68 = vld [vmem:[#allocation5 + $0x30] sm:$0xff]
    %v69 = vld [vmem:[#allocation5 + $0x38] sm:$0xff]
    %v70 = vld [vmem:[#allocation5 + $0x40] sm:$0xff]
    %v71 = vld [vmem:[#allocation5 + $0x48] sm:$0xff]
    %v72 = vld [vmem:[#allocation5 + $0x50] sm:$0xff]
    %v73 = vld [vmem:[#allocation5 + $0x58] sm:$0xff]
    %v74 = vld [vmem:[#allocation5 + $0x60] sm:$0xff]
    %v75 = vld [vmem:[#allocation5 + $0x68] sm:$0xff]
    %v76 = vld [vmem:[#allocation5 + $0x70] sm:$0xff]
    %v77 = vld [vmem:[#allocation5 + $0x78] sm:$0xff]
    %v78 = vld [vmem:[#allocation5 + $0x80] sm:$0xff]
    %v79 = vld [vmem:[#allocation5 + $0x88] sm:$0xff]
    %v80 = vld [vmem:[#allocation5 + $0x90] sm:$0xff]
    %v81 = vld [vmem:[#allocation5 + $0x98] sm:$0xff]
    %v82 = vld [vmem:[#allocation5 + $0xa0] sm:$0xff]
    %v83 = vld [vmem:[#allocation5 + $0xa8] sm:$0xff]
    %v84 = vld [vmem:[#allocation5 + $0xb0] sm:$0xff]
    %v85 = vld [vmem:[#allocation5 + $0xb8] sm:$0xff]
    %v86 = vld [vmem:[#allocation5 + $0xc0] sm:$0xff]
    %v87 = vld [vmem:[#allocation5 + $0xc8] sm:$0xff]
    %v88 = vld [vmem:[#allocation5 + $0xd0] sm:$0xff]
    %v89 = vld [vmem:[#allocation5 + $0xd8] sm:$0xff]
    %v90 = vld [vmem:[#allocation5 + $0xe0] sm:$0xff]
    %v91 = vld [vmem:[#allocation5 + $0xe8] sm:$0xff]
    %v92 = vld [vmem:[#allocation5 + $0xf0] sm:$0xff]
    %v93 = vld [vmem:[#allocation5 + $0xf8] sm:$0xff]
    %v94 = vld [vmem:[#allocation5 + $0x100] sm:$0xff]
    %v95 = vld [vmem:[#allocation5 + $0x108] sm:$0xff]
    %v96 = vld [vmem:[#allocation5 + $0x110] sm:$0xff]
    %v97 = vld [vmem:[#allocation5 + $0x118] sm:$0xff]
    %v98 = vld [vmem:[#allocation5 + $0x120] sm:$0xff]
    %v99 = vld [vmem:[#allocation5 + $0x128] sm:$0xff]
    %v100 = vld [vmem:[#allocation5 + $0x130] sm:$0xff]
    %v101 = vld [vmem:[#allocation5 + $0x138] sm:$0xff]
    %v102 = vld [vmem:[#allocation5 + $0x140] sm:$0xff]
    %v103 = vld [vmem:[#allocation5 + $0x148] sm:$0xff]
    %v104 = vld [vmem:[#allocation5 + $0x150] sm:$0xff]
    %v105 = vld [vmem:[#allocation5 + $0x158] sm:$0xff]
    %v106 = vld [vmem:[#allocation5 + $0x160] sm:$0xff]
    %v107 = vld [vmem:[#allocation5 + $0x168] sm:$0xff]
    %v108 = vld [vmem:[#allocation5 + $0x170] sm:$0xff]
    %v109 = vld [vmem:[#allocation5 + $0x178] sm:$0xff]
    %v110 = vld [vmem:[#allocation7] sm:$0x7]
    %v112 = vperm.slane %v110, 0
    %v113 = vperm.slane %v110, 1
    %v114 = vperm.slane %v110, 2
    %118 = vmatpush.msra.mxu0 %v107
    %119 = vmatpush.msra.mxu0 %v104
    %120 = vmatpush.msra.mxu0 %v101
    %121 = vmatpush.msra.mxu0 %v98
    %122 = vmatpush.msra.mxu0 %v95
    %123 = vmatpush.msra.mxu0 %v92
    %124 = vmatpush.msra.mxu0 %v89
    %125 = vmatpush.msra.mxu0 %v86
    %126 = vmatpush.msra.mxu0 %v83
    %127 = vmatpush.msra.mxu0 %v80
    %128 = vmatpush.msra.mxu0 %v77
    %129 = vmatpush.msra.mxu0 %v74
    %130 = vmatpush.msra.mxu0 %v71
    %131 = vmatpush.msra.mxu0 %v68
    %132 = vmatpush.msra.mxu0 %v65
    %133 = vmatpush.msra.mxu0 %v62
    %134 = vmatmul.f32.gmra.mxu0 %v60
    %v135 = vpop.f32.mrf.mxu0
    %v136 = vadd.f32 %v112, %v135
    %137 = vmatmul.f32.gmra.mxu0 %v61
    %v138 = vpop.f32.mrf.mxu0
    %v139 = vadd.f32 %v112, %v138
    %140 = vdwg.mxu0
    %141 = vmatpush.msra.mxu0 %v108
    %142 = vmatpush.msra.mxu0 %v105
    %143 = vmatpush.msra.mxu0 %v102
    %144 = vmatpush.msra.mxu0 %v99
    %145 = vmatpush.msra.mxu0 %v96
    %146 = vmatpush.msra.mxu0 %v93
    %147 = vmatpush.msra.mxu0 %v90
    %148 = vmatpush.msra.mxu0 %v87
    %149 = vmatpush.msra.mxu0 %v84
    %150 = vmatpush.msra.mxu0 %v81
    %151 = vmatpush.msra.mxu0 %v78
    %152 = vmatpush.msra.mxu0 %v75
    %153 = vmatpush.msra.mxu0 %v72
    %154 = vmatpush.msra.mxu0 %v69
    %155 = vmatpush.msra.mxu0 %v66
    %156 = vmatpush.msra.mxu0 %v63
    %157 = vmatmul.f32.gmra.mxu0 %v60
    %v158 = vpop.f32.mrf.mxu0
    %v159 = vadd.f32 %v113, %v158
    %160 = vmatmul.f32.gmra.mxu0 %v61
    %v161 = vpop.f32.mrf.mxu0
    %v162 = vadd.f32 %v113, %v161
    %163 = vdwg.mxu0
    %164 = vmatpush.msra.mxu0 %v109
    %165 = vmatpush.msra.mxu0 %v106
    %166 = vmatpush.msra.mxu0 %v103
    %167 = vmatpush.msra.mxu0 %v100
    %168 = vmatpush.msra.mxu0 %v97
    %169 = vmatpush.msra.mxu0 %v94
    %170 = vmatpush.msra.mxu0 %v91
    %171 = vmatpush.msra.mxu0 %v88
    %172 = vmatpush.msra.mxu0 %v85
    %173 = vmatpush.msra.mxu0 %v82
    %174 = vmatpush.msra.mxu0 %v79
    %175 = vmatpush.msra.mxu0 %v76
    %176 = vmatpush.msra.mxu0 %v73
    %177 = vmatpush.msra.mxu0 %v70
    %178 = vmatpush.msra.mxu0 %v67
    %179 = vmatpush.msra.mxu0 %v64
    %180 = vmatmul.f32.gmra.mxu0 %v60
    %v181 = vpop.f32.mrf.mxu0
    %v182 = vadd.f32 %v114, %v181
    %183 = vmatmul.f32.gmra.mxu0 %v61
    %v184 = vpop.f32.mrf.mxu0
    %v185 = vadd.f32 %v114, %v184
    %186 = vdwg.mxu0
    %187 = vst [vmem:[#allocation8] sm:$0xff] %v136
    %188 = vst [vmem:[#allocation8 + $0x8] sm:$0xff] %v159
    %189 = vst [vmem:[#allocation8 + $0x10] sm:$0xff] %v182
    %190 = vst [vmem:[#allocation8 + $0x18] sm:$0xff] %v139
    %191 = vst [vmem:[#allocation8 + $0x20] sm:$0xff] %v162
    %192 = vst [vmem:[#allocation8 + $0x28] sm:$0xff] %v185
    // Predicated region
    $region26: #{tpu_custom_call.1} parent=1 // pred_check
      _
    $region27: #{tpu_custom_call.1} parent=1 // pred_check_branch
      %194 = sbr.rel (0) target = $region29
    $region28: #{tpu_custom_call.1} parent=1 // pred_region
      %196 = vsyncadd [#allocation4], 0
      %s197 = sshll.u32 [#allocation8], 4
      %s198 = int_to_ptr.vmem [resolvable:$true] %s197
      %s199 = sshll.u32 %s3, 4
      %s200 = int_to_ptr.hbm [resolvable:$true] %s199
      %205 = dma.vmem_to_hbm [thread:$0]  %s198, 768, %s200, [#allocation4], 384, 384, 24
    $region29: #{tpu_custom_call.1} parent=1 // pred_fallthru
      _
    // Predicated region
    $region30: #{tpu_custom_call.1} parent=1 // pred_check
      _
    $region31: #{tpu_custom_call.1} parent=1 // pred_check_branch
      %207 = sbr.rel (0) target = $region33
    $region32: #{tpu_custom_call.1} parent=1 // pred_region
      %209 = dma.done [#allocation4], 768
    $region33: #{tpu_custom_call.1} parent=1 // pred_fallthru
      _
    %210 = vsyncpa [#allocation3], 1
    %211 = vsyncpa [#allocation6], 1
    %212 = vsyncpa [#allocation4], 1

</llo_original>
